<compile_context>
chip_gen: v7x
topology: tpu7x:2x2x1
jax: 0.10.0
libtpu: 0.0.40
codegen_flags: <defaults>
</compile_context>

<pallas_src>
import functools

import jax
import jax.numpy as jnp
from jax.experimental import pallas as pl
from jax.experimental.pallas import tpu as pltpu

LANE = 128
VMEM_BUDGET = 24 << 20   # per-call working-set target (fits every gen's default scoped VMEM)
VMEM_LIMIT = 48 << 20    # explicit limit; leaves headroom on v7x's 64 MiB physical VMEM


def _round_up(x, m):
    return ((x + m - 1) // m) * m


# ----------------------------------------------------------------------------
# Kernel
# ----------------------------------------------------------------------------
def mario_agent_kernel(obs_ref, hid_ref, wco_ref, wch_ref, wh_ref, b_ref, out_ref):
    # obs_ref: (TILE_B, D_obs)   streamed, matmul dtype (bf16 by default)
    # hid_ref: (TILE_B, NS)      streamed, f32 (recurrent state stays f32)
    # wco_ref: (D_obs, 128)      VMEM-resident, matmul dtype
    # wch_ref: (NS, 128)         VMEM-resident, f32
    # wh_ref : (2, 128, 128)     [0]=fused head layer-1, [1]=fused head layer-2
    # b_ref  : (3, 128)          row0=bc, row1=[b1p|b1v], row2=b2 (slab-aligned)
    # out_ref: (TILE_B, 128)     lane-dense f32 output slab
    b = b_ref[...]

    # ---- stand-in CTM: sync = tanh(obs @ Wc_obs + hidden @ Wc_h + bc) ----
    acc = jnp.dot(obs_ref[...], wco_ref[...], preferred_element_type=jnp.float32)
    acc = acc + jnp.dot(hid_ref[...], wch_ref[...], preferred_element_type=jnp.float32)
    sync = jnp.tanh(acc + b[0:1, :])   # cols >= NS are exactly 0 (zero weight/bias padding)

    # ---- fused policy|value first layer: Linear -> ReLU ----
    h = jnp.maximum(
        jnp.dot(sync.astype(wh_ref.dtype), wh_ref[0],
                preferred_element_type=jnp.float32) + b[1:2, :],
        0.0,
    )  # cols [0:64) policy hidden, [64:128) value hidden

    # ---- fused second layer; columns land directly at their slab positions ----
    head = (
        jnp.dot(h.astype(wh_ref.dtype), wh_ref[1],
                preferred_element_type=jnp.float32) + b[2:3, :]
    )  # nonzero only in cols [NS, NS+NA]

    # slab = hidden lanes (sync) + logits/value lanes (head); no overlap.
    out_ref[...] = (sync + head).astype(out_ref.dtype)


# ----------------------------------------------------------------------------
# Parameter packing
# ----------------------------------------------------------------------------
def pack_params(params, n_synch_out, n_actions, hidden=64,
                matmul_dtype=jnp.bfloat16):
    """Pack the 11 PyTorch-style parameter arrays into 4 kernel operands."""
    (wc_obs, wc_h, bc, w1p, b1p, w2p, b2p, w1v, b1v, w2v, b2v) = params
    assert 2 * hidden <= LANE
    assert n_synch_out + n_actions + 1 <= LANE
    d_obs = wc_obs.shape[0]

    # CTM projections (obs part streams in matmul_dtype; recurrent part stays f32).
    wco = jnp.zeros((d_obs, LANE), jnp.float32).at[:, :n_synch_out].set(wc_obs)
    wch = jnp.zeros((n_synch_out, LANE), jnp.float32).at[:, :n_synch_out].set(wc_h)

    # Fused head layer 1: [w1p | w1v] along columns.
    w1 = jnp.zeros((LANE, LANE), jnp.float32)
    w1 = w1.at[:n_synch_out, :hidden].set(w1p)
    w1 = w1.at[:n_synch_out, hidden:2 * hidden].set(w1v)

    # Fused head layer 2: columns placed at their final slab positions.
    w2 = jnp.zeros((LANE, LANE), jnp.float32)
    w2 = w2.at[:hidden, n_synch_out:n_synch_out + n_actions].set(w2p)
    w2 = w2.at[hidden:2 * hidden, n_synch_out + n_actions].set(w2v[:, 0])
    w_heads = jnp.stack([w1, w2])  # (2, 128, 128)

    # All biases in one (3, 128) f32 array.
    biases = jnp.zeros((3, LANE), jnp.float32)
    biases = biases.at[0, :n_synch_out].set(bc[0])
    biases = biases.at[1, :hidden].set(b1p[0])
    biases = biases.at[1, hidden:2 * hidden].set(b1v[0])
    biases = biases.at[2, n_synch_out:n_synch_out + n_actions].set(b2p[0])
    biases = biases.at[2, n_synch_out + n_actions].set(b2v[0, 0])

    return (wco.astype(matmul_dtype), wch, w_heads.astype(matmul_dtype), biases)


# ----------------------------------------------------------------------------
# Wrapper
# ----------------------------------------------------------------------------
def _choose_tile_b(B, d_obs, n_synch_out, x_itemsize, cap=512):
    """Largest batch tile that keeps the double-buffered working set under budget."""
    sub = 16 if x_itemsize == 2 else 8
    per_row = 2 * (d_obs * x_itemsize + n_synch_out * 4 + LANE * 4)       # streamed, 2-deep
    resident = 2 * (d_obs * LANE * x_itemsize + n_synch_out * LANE * 4
                    + 2 * LANE * LANE * x_itemsize + 3 * LANE * 4)        # weights (conservative)
    t = max(sub, (VMEM_BUDGET - resident) // per_row)
    t = min(int(t), cap, _round_up(B, sub))      # never over-pad a small batch
    return max(sub, (t // sub) * sub)


def mario_agent_forward(obs, hidden_states, packed, *, n_synch_out, n_actions,
                        tile_b=None):
    """obs: (B, C, H, W) NCHW like PyTorch; hidden_states: (B, n_synch_out)."""
    wco, wch, w_heads, biases = packed
    matmul_dtype = wco.dtype
    B = obs.shape[0]
    d_obs = wco.shape[0]

    obs_flat = obs.reshape(B, -1).astype(matmul_dtype)   # row-major == torch .view(B,-1)
    assert obs_flat.shape[1] == d_obs
    hid = hidden_states.astype(jnp.float32)              # recurrent state stays f32

    if tile_b is None:
        tile_b = _choose_tile_b(B, d_obs, n_synch_out,
                                jnp.dtype(matmul_dtype).itemsize)
    b_pad = _round_up(B, tile_b)
    if b_pad != B:
        obs_flat = jnp.pad(obs_flat, ((0, b_pad - B), (0, 0)))
        hid = jnp.pad(hid, ((0, b_pad - B), (0, 0)))
    num_tiles = b_pad // tile_b

    slab = pl.pallas_call(
        mario_agent_kernel,
        out_shape=jax.ShapeDtypeStruct((b_pad, LANE), jnp.float32),
        grid=(num_tiles,),
        in_specs=[
            pl.BlockSpec((tile_b, d_obs), lambda i: (i, 0)),        # obs: streamed per tile
            pl.BlockSpec((tile_b, n_synch_out), lambda i: (i, 0)),  # hidden: streamed per tile
            pl.BlockSpec((d_obs, LANE), lambda i: (0, 0)),          # weights: VMEM-resident
            pl.BlockSpec((n_synch_out, LANE), lambda i: (0, 0)),
            pl.BlockSpec((2, LANE, LANE), lambda i: (0, 0, 0)),
            pl.BlockSpec((3, LANE), lambda i: (0, 0)),
        ],
        out_specs=pl.BlockSpec((tile_b, LANE), lambda i: (i, 0)),
        compiler_params=pltpu.CompilerParams(
            dimension_semantics=("parallel",),     # shards batch tiles over v7x's 2 TCs
            vmem_limit_bytes=VMEM_LIMIT,
        ),
    )(obs_flat, hid, wco, wch, w_heads, biases)

    hid_new = slab[:B, :n_synch_out]
    logits = slab[:B, n_synch_out:n_synch_out + n_actions]
    value = slab[:B, n_synch_out + n_actions]      # already squeezed
    return logits, value, hid_new


# ----------------------------------------------------------------------------
# Reference + init
# ----------------------------------------------------------------------------
def reference_forward(obs, hidden_states, params):
    (wc_obs, wc_h, bc, w1p, b1p, w2p, b2p, w1v, b1v, w2v, b2v) = params
    B = obs.shape[0]
    of = obs.reshape(B, -1)
    sync = jnp.tanh(of @ wc_obs + hidden_states @ wc_h + bc)
    logits = jnp.maximum(sync @ w1p + b1p, 0.0) @ w2p + b2p
    value = (jnp.maximum(sync @ w1v + b1v, 0.0) @ w2v + b2v)[:, 0]
    return logits, value, sync


def init_params(key, d_obs, n_synch_out, n_actions, hidden=64):
    ks = jax.random.split(key, 11)

    def lin(k, fan_in, shape):
        bound = 1.0 / jnp.sqrt(fan_in)
        return jax.random.uniform(k, shape, jnp.float32, -bound, bound)

    wc_obs = lin(ks[0], d_obs, (d_obs, n_synch_out))
    wc_h = lin(ks[1], n_synch_out, (n_synch_out, n_synch_out))
    bc = lin(ks[2], n_synch_out, (1, n_synch_out))
    w1p = lin(ks[3], n_synch_out, (n_synch_out, hidden))
    b1p = lin(ks[4], n_synch_out, (1, hidden))
    w2p = lin(ks[5], hidden, (hidden, n_actions))
    b2p = lin(ks[6], hidden, (1, n_actions))
    w1v = lin(ks[7], n_synch_out, (n_synch_out, hidden))
    b1v = lin(ks[8], n_synch_out, (1, hidden))
    w2v = lin(ks[9], hidden, (hidden, 1))
    b2v = lin(ks[10], hidden, (1, 1))
    return (wc_obs, wc_h, bc, w1p, b1p, w2p, b2p, w1v, b1v, w2v, b2v)


# ----------------------------------------------------------------------------
# Demo / checks
# ----------------------------------------------------------------------------
if __name__ == "__main__":
    key = jax.random.PRNGKey(0)
    k_obs, k_hid, k_param, k_obs2, k_hid2 = jax.random.split(key, 5)

    B, C, H, W = 2, 4, 16, 16
    n_synch_out, n_actions, hidden = 32, 7, 64
    d_obs = C * H * W

    obs = jax.random.normal(k_obs, (B, C, H, W), jnp.float32)
    hidden_states = jax.random.normal(k_hid, (B, n_synch_out), jnp.float32)
    params = init_params(k_param, d_obs, n_synch_out, n_actions, hidden)

    logits_ref, value_ref, sync_ref = reference_forward(obs, hidden_states, params)

    fwd = jax.jit(functools.partial(mario_agent_forward,
                                    n_synch_out=n_synch_out, n_actions=n_actions))

    # ---- f32 path: strict check ----
    packed_f32 = pack_params(params, n_synch_out, n_actions, hidden,
                             matmul_dtype=jnp.float32)
    logits, value, hid_new = fwd(obs, hidden_states, packed_f32)
    jax.block_until_ready((logits, value, hid_new))
    assert logits.shape == (B, n_actions)
    assert value.shape == (B,)
    assert hid_new.shape == (B, n_synch_out)
    assert jnp.allclose(logits, logits_ref, atol=1e-5)
    assert jnp.allclose(value, value_ref, atol=1e-5)
    assert jnp.allclose(hid_new, sync_ref, atol=1e-5)

    # ---- bf16 streaming path (default; halves obs/weight DMA bytes): loose check ----
    packed_bf16 = pack_params(params, n_synch_out, n_actions, hidden)  # bf16 default
    logits_b, value_b, hid_b = fwd(obs, hidden_states, packed_bf16)
    jax.block_until_ready((logits_b, value_b, hid_b))
    assert jnp.allclose(logits_b, logits_ref, atol=5e-2, rtol=5e-2)
    assert jnp.allclose(value_b, value_ref, atol=5e-2, rtol=5e-2)
    assert jnp.allclose(hid_b, sync_ref, atol=5e-2, rtol=5e-2)

    # ---- multi-tile grid check (exercises the batch-tiled index_maps) ----
    B2 = 40
    obs2 = jax.random.normal(k_obs2, (B2, C, H, W), jnp.float32)
    hid2 = jax.random.normal(k_hid2, (B2, n_synch_out), jnp.float32)
    lr2, vr2, sr2 = reference_forward(obs2, hid2, params)
    l2, v2, h2 = mario_agent_forward(obs2, hid2, packed_f32,
                                     n_synch_out=n_synch_out, n_actions=n_actions,
                                     tile_b=16)   # forces grid of 3 tiles (40 -> 48)
    jax.block_until_ready((l2, v2, h2))
    assert l2.shape == (B2, n_actions) and v2.shape == (B2,)
    assert jnp.allclose(l2, lr2, atol=1e-5)
    assert jnp.allclose(v2, vr2, atol=1e-5)
    assert jnp.allclose(h2, sr2, atol=1e-5)

    print("KERNEL_OK")
</pallas_src>

<mosaic_0001>
module attributes {stable_mosaic.version = 11 : i64} {
  func.func @mario_agent_kernel(%arg0: i32, %arg1: memref<8x1024xf32, #tpu.memory_space<vmem>>, %arg2: memref<8x32xf32, #tpu.memory_space<vmem>>, %arg3: memref<1024x128xf32, #tpu.memory_space<vmem>>, %arg4: memref<32x128xf32, #tpu.memory_space<vmem>>, %arg5: memref<2x128x128xf32, #tpu.memory_space<vmem>>, %arg6: memref<3x128xf32, #tpu.memory_space<vmem>>, %arg7: memref<8x128xf32, #tpu.memory_space<vmem>>) attributes {dimension_semantics = [#tpu.dimension_semantics<parallel>], iteration_bounds = array<i64: 1>, scalar_prefetch = 0 : i64, scratch_operands = 0 : i64, tpu.core_type = #tpu.core_type<tc>, window_params = [{transform_indices = @transform_0, window_bounds = array<i64: 8, 1024>}, {transform_indices = @transform_1, window_bounds = array<i64: 8, 32>}, {pipeline_mode = #tpu.pipeline_mode<synchronous>, transform_indices = @transform_2, window_bounds = array<i64: 1024, 128>}, {pipeline_mode = #tpu.pipeline_mode<synchronous>, transform_indices = @transform_3, window_bounds = array<i64: 32, 128>}, {pipeline_mode = #tpu.pipeline_mode<synchronous>, transform_indices = @transform_4, window_bounds = array<i64: 2, 128, 128>}, {pipeline_mode = #tpu.pipeline_mode<synchronous>, transform_indices = @transform_5, window_bounds = array<i64: 3, 128>}, {transform_indices = @transform_6, window_bounds = array<i64: 8, 128>}]} {
    %c0 = arith.constant 0 : index
    %c0_0 = arith.constant 0 : index
    %0 = vector.load %arg6[%c0, %c0_0] : memref<3x128xf32, #tpu.memory_space<vmem>>, vector<3x128xf32>
    %c0_1 = arith.constant 0 : index
    %c0_2 = arith.constant 0 : index
    %1 = vector.load %arg1[%c0_1, %c0_2] : memref<8x1024xf32, #tpu.memory_space<vmem>>, vector<8x1024xf32>
    %c0_3 = arith.constant 0 : index
    %c0_4 = arith.constant 0 : index
    %2 = vector.load %arg3[%c0_3, %c0_4] : memref<1024x128xf32, #tpu.memory_space<vmem>>, vector<1024x128xf32>
    %cst = arith.constant dense<0.000000e+00> : vector<8x128xf32>
    %3 = tpu.matmul %1, %2, %cst {dimension_numbers = #tpu.dot_dimension_numbers<[1], [0], [0], [1], [0, 0, 1, 1], [], []>} : vector<8x1024xf32>, vector<1024x128xf32>, vector<8x128xf32> -> vector<8x128xf32>
    %c0_5 = arith.constant 0 : index
    %c0_6 = arith.constant 0 : index
    %4 = vector.load %arg2[%c0_5, %c0_6] : memref<8x32xf32, #tpu.memory_space<vmem>>, vector<8x32xf32>
    %c0_7 = arith.constant 0 : index
    %c0_8 = arith.constant 0 : index
    %5 = vector.load %arg4[%c0_7, %c0_8] : memref<32x128xf32, #tpu.memory_space<vmem>>, vector<32x128xf32>
    %cst_9 = arith.constant dense<0.000000e+00> : vector<8x128xf32>
    %6 = tpu.matmul %4, %5, %cst_9 {dimension_numbers = #tpu.dot_dimension_numbers<[1], [0], [0], [1], [0, 0, 1, 1], [], []>} : vector<8x32xf32>, vector<32x128xf32>, vector<8x128xf32> -> vector<8x128xf32>
    %7 = arith.addf %3, %6 : vector<8x128xf32>
    %8 = vector.extract_strided_slice %0 {offsets = [0, 0], sizes = [1, 128], strides = [1, 1]} : vector<3x128xf32> to vector<1x128xf32>
    %9 = vector.broadcast %8 : vector<1x128xf32> to vector<8x128xf32>
    %10 = arith.addf %7, %9 : vector<8x128xf32>
    %11 = math.tanh %10 : vector<8x128xf32>
    %c0_10 = arith.constant 0 : index
    %c0_11 = arith.constant 0 : index
    %c0_12 = arith.constant 0 : index
    %12 = vector.load %arg5[%c0_10, %c0_11, %c0_12] : memref<2x128x128xf32, #tpu.memory_space<vmem>>, vector<1x128x128xf32>
    %13 = vector.shape_cast %12 : vector<1x128x128xf32> to vector<128x128xf32>
    %cst_13 = arith.constant dense<0.000000e+00> : vector<8x128xf32>
    %14 = tpu.matmul %11, %13, %cst_13 {dimension_numbers = #tpu.dot_dimension_numbers<[1], [0], [0], [1], [0, 0, 1, 1], [], []>} : vector<8x128xf32>, vector<128x128xf32>, vector<8x128xf32> -> vector<8x128xf32>
    %15 = vector.extract_strided_slice %0 {offsets = [1, 0], sizes = [1, 128], strides = [1, 1]} : vector<3x128xf32> to vector<1x128xf32>
    %16 = vector.broadcast %15 : vector<1x128xf32> to vector<8x128xf32>
    %17 = arith.addf %14, %16 : vector<8x128xf32>
    %cst_14 = arith.constant 0.000000e+00 : f32
    %18 = vector.broadcast %cst_14 : f32 to vector<8x128xf32>
    %19 = arith.maximumf %17, %18 : vector<8x128xf32>
    %c1 = arith.constant 1 : index
    %c0_15 = arith.constant 0 : index
    %c0_16 = arith.constant 0 : index
    %20 = vector.load %arg5[%c1, %c0_15, %c0_16] : memref<2x128x128xf32, #tpu.memory_space<vmem>>, vector<1x128x128xf32>
    %21 = vector.shape_cast %20 : vector<1x128x128xf32> to vector<128x128xf32>
    %cst_17 = arith.constant dense<0.000000e+00> : vector<8x128xf32>
    %22 = tpu.matmul %19, %21, %cst_17 {dimension_numbers = #tpu.dot_dimension_numbers<[1], [0], [0], [1], [0, 0, 1, 1], [], []>} : vector<8x128xf32>, vector<128x128xf32>, vector<8x128xf32> -> vector<8x128xf32>
    %23 = vector.extract_strided_slice %0 {offsets = [2, 0], sizes = [1, 128], strides = [1, 1]} : vector<3x128xf32> to vector<1x128xf32>
    %24 = vector.broadcast %23 : vector<1x128xf32> to vector<8x128xf32>
    %25 = arith.addf %22, %24 : vector<8x128xf32>
    %26 = arith.addf %11, %25 : vector<8x128xf32>
    %c0_18 = arith.constant 0 : index
    %c0_19 = arith.constant 0 : index
    %27 = vector.load %arg7[%c0_18, %c0_19] : memref<8x128xf32, #tpu.memory_space<vmem>>, vector<8x128xf32>
    tpu.vector_store %arg7[%c0_18, %c0_19], %26 {strides = array<i32>} : memref<8x128xf32, #tpu.memory_space<vmem>>, vector<8x128xf32>,
    return
  }
  func.func @transform_0(%arg0: i32) -> (i32, i32) {
    %c0_i32 = arith.constant 0 : i32
    %c0_i32_0 = arith.constant 0 : i32
    return %arg0, %c0_i32 : i32, i32
  }
  func.func @transform_1(%arg0: i32) -> (i32, i32) {
    %c0_i32 = arith.constant 0 : i32
    %c0_i32_0 = arith.constant 0 : i32
    return %arg0, %c0_i32 : i32, i32
  }
  func.func @transform_2(%arg0: i32) -> (i32, i32) {
    %c0_i32 = arith.constant 0 : i32
    %c0_i32_0 = arith.constant 0 : i32
    %c0_i32_1 = arith.constant 0 : i32
    return %c0_i32, %c0_i32_0 : i32, i32
  }
  func.func @transform_3(%arg0: i32) -> (i32, i32) {
    %c0_i32 = arith.constant 0 : i32
    %c0_i32_0 = arith.constant 0 : i32
    %c0_i32_1 = arith.constant 0 : i32
    return %c0_i32, %c0_i32_0 : i32, i32
  }
  func.func @transform_4(%arg0: i32) -> (i32, i32, i32) {
    %c0_i32 = arith.constant 0 : i32
    %c0_i32_0 = arith.constant 0 : i32
    %c0_i32_1 = arith.constant 0 : i32
    %c0_i32_2 = arith.constant 0 : i32
    return %c0_i32, %c0_i32_0, %c0_i32_1 : i32, i32, i32
  }
  func.func @transform_5(%arg0: i32) -> (i32, i32) {
    %c0_i32 = arith.constant 0 : i32
    %c0_i32_0 = arith.constant 0 : i32
    %c0_i32_1 = arith.constant 0 : i32
    return %c0_i32, %c0_i32_0 : i32, i32
  }
  func.func @transform_6(%arg0: i32) -> (i32, i32) {
    %c0_i32 = arith.constant 0 : i32
    %c0_i32_0 = arith.constant 0 : i32
    return %arg0, %c0_i32 : i32, i32
  }
}

</mosaic_0001>

<llo_original>
// kernel: mario_agent_forward.1
$region0: #{mario_agent_forward.1}
  #allocation0 [shape = 'u32[]', space=smem, size = 0x4, offset = 0x4, fixed_abs, tag = 'smem constant byte address 0x4 - core index']
  #allocation1 [shape = 'u32[144,128]{1,0:T(1,128)}', space=vmem, size = 0x12000, scoped, tag = 'internal scratch']
  %s0 = inlined_call_operand.vmem [shape: f32[8,1024], index: 0, kind: input, shape index: {}]
  %s1 = inlined_call_operand.vmem [shape: f32[8,32], index: 1, kind: input, shape index: {}]
  %s2 = inlined_call_operand.hbm [shape: f32[1024,128], index: 2, kind: input, shape index: {}]
  %s3 = inlined_call_operand.vmem [shape: f32[32,128], index: 3, kind: input, shape index: {}]
  %s4 = inlined_call_operand.hbm [shape: f32[2,128,128], index: 4, kind: input, shape index: {}]
  %s5 = inlined_call_operand.vmem [shape: f32[3,128], index: 5, kind: input, shape index: {}]
  %s6 = inlined_call_operand.vmem [shape: f32[8,128], index: 6, kind: output, shape index: {}]
  %s7 = sld [smem:[#allocation0]]
  $region42: #{mario_agent_forward.1} parent=0
    _
  %s9 = ssub.s32 1, %s7
  %s10 = scalar_select 0, %s9, %s7
  $region1: #{mario_agent_forward.1} parent=0
    #allocation2 [shape = 'u8[524288]{0}', space=vmem, size = 0x80000, scoped, tag = 'input window, operand 2, single buffered']
    #allocation3 [shape = 's32[1]{0}', space=sflag, size = 0x4, scoped, tag = 'scoped memory for mario_agent_forward.1']
    #allocation4 [shape = 'u8[131072]{0}', space=vmem, size = 0x20000, scoped, tag = 'input window, operand 4, single buffered']
    #allocation5 [shape = 's32[1]{0}', space=sflag, size = 0x4, scoped, tag = 'scoped memory for mario_agent_forward.1']
    %11 = vsyncpa [#allocation3], 0
    %12 = vsyncpa [#allocation5], 0
    // Predicated region
    $region2: #{mario_agent_forward.1} parent=1 // pred_check
      _
    $region3: #{mario_agent_forward.1} parent=1 // pred_check_branch
      %14 = sbr.rel (0) target = $region5
    $region4: #{mario_agent_forward.1} parent=1 // pred_region
      _
    $region5: #{mario_agent_forward.1} parent=1 // pred_fallthru
      _
    // Predicated region
    $region6: #{mario_agent_forward.1} parent=1 // pred_check
      _
    $region7: #{mario_agent_forward.1} parent=1 // pred_check_branch
      %16 = sbr.rel (0) target = $region9
    $region8: #{mario_agent_forward.1} parent=1 // pred_region
      _
    $region9: #{mario_agent_forward.1} parent=1 // pred_fallthru
      _
    // Predicated region
    $region10: #{mario_agent_forward.1} parent=1 // pred_check
      _
    $region11: #{mario_agent_forward.1} parent=1 // pred_check_branch
      %18 = sbr.rel (0) target = $region13
    $region12: #{mario_agent_forward.1} parent=1 // pred_region
      %s20 = ssub.s32 16384, 16384
      %21 = vsyncadd [#allocation3], %s20
      %s22 = sshll.u32 [#allocation2], 4
      %s23 = int_to_ptr.vmem [resolvable:$true] %s22
      %28 = dma.hbm_to_vmem [thread:$0]  %s2, 16384, %s23, [#allocation3], 128, 128, 8
    $region13: #{mario_agent_forward.1} parent=1 // pred_fallthru
      _
    // Predicated region
    $region14: #{mario_agent_forward.1} parent=1 // pred_check
      _
    $region15: #{mario_agent_forward.1} parent=1 // pred_check_branch
      %30 = sbr.rel (0) target = $region17
    $region16: #{mario_agent_forward.1} parent=1 // pred_region
      _
    $region17: #{mario_agent_forward.1} parent=1 // pred_fallthru
      _
    // Predicated region
    $region18: #{mario_agent_forward.1} parent=1 // pred_check
      _
    $region19: #{mario_agent_forward.1} parent=1 // pred_check_branch
      %32 = sbr.rel (0) target = $region21
    $region20: #{mario_agent_forward.1} parent=1 // pred_region
      %s34 = ssub.s32 4096, 4096
      %35 = vsyncadd [#allocation5], %s34
      %s36 = sshll.u32 [#allocation4], 4
      %s37 = int_to_ptr.vmem [resolvable:$true] %s36
      %42 = dma.hbm_to_vmem [thread:$0]  %s4, 4096, %s37, [#allocation5], 128, 128, 8
    $region21: #{mario_agent_forward.1} parent=1 // pred_fallthru
      _
    // Predicated region
    $region22: #{mario_agent_forward.1} parent=1 // pred_check
      _
    $region23: #{mario_agent_forward.1} parent=1 // pred_check_branch
      %44 = sbr.rel (0) target = $region25
    $region24: #{mario_agent_forward.1} parent=1 // pred_region
      _
    $region25: #{mario_agent_forward.1} parent=1 // pred_fallthru
      _
    // Predicated region
    $region26: #{mario_agent_forward.1} parent=1 // pred_check
      _
    $region27: #{mario_agent_forward.1} parent=1 // pred_check_branch
      %46 = sbr.rel (0) target = $region29
    $region28: #{mario_agent_forward.1} parent=1 // pred_region
      %47 = dma.done [#allocation3], 16384
    $region29: #{mario_agent_forward.1} parent=1 // pred_fallthru
      _
    // Predicated region
    $region30: #{mario_agent_forward.1} parent=1 // pred_check
      _
    $region31: #{mario_agent_forward.1} parent=1 // pred_check_branch
      %49 = sbr.rel (0) target = $region33
    $region32: #{mario_agent_forward.1} parent=1 // pred_region
      %50 = dma.done [#allocation5], 4096
    $region33: #{mario_agent_forward.1} parent=1 // pred_fallthru
      _
    %v51 = vld [vmem:[%s5] sm:$0x7]
    %v52 = vld [vmem:[%s0] sm:$0xff]
    %v53 = vld [vmem:[%s0 + $0x8] sm:$0xff]
    %v54 = vld [vmem:[%s0 + $0x10] sm:$0xff]
    %v55 = vld [vmem:[%s0 + $0x18] sm:$0xff]
    %v56 = vld [vmem:[%s0 + $0x20] sm:$0xff]
    %v57 = vld [vmem:[%s0 + $0x28] sm:$0xff]
    %v58 = vld [vmem:[%s0 + $0x30] sm:$0xff]
    %v59 = vld [vmem:[%s0 + $0x38] sm:$0xff]
    %v60 = vld [vmem:[#allocation2] sm:$0xff]
    %v61 = vld [vmem:[#allocation2 + $0x8] sm:$0xff]
    %v62 = vld [vmem:[#allocation2 + $0x10] sm:$0xff]
    %v63 = vld [vmem:[#allocation2 + $0x18] sm:$0xff]
    %v64 = vld [vmem:[#allocation2 + $0x20] sm:$0xff]
    %v65 = vld [vmem:[#allocation2 + $0x28] sm:$0xff]
    %v66 = vld [vmem:[#allocation2 + $0x30] sm:$0xff]
    %v67 = vld [vmem:[#allocation2 + $0x38] sm:$0xff]
    %v68 = vld [vmem:[#allocation2 + $0x40] sm:$0xff]
    %v69 = vld [vmem:[#allocation2 + $0x48] sm:$0xff]
    %v70 = vld [vmem:[#allocation2 + $0x50] sm:$0xff]
    %v71 = vld [vmem:[#allocation2 + $0x58] sm:$0xff]
    %v72 = vld [vmem:[#allocation2 + $0x60] sm:$0xff]
    %v73 = vld [vmem:[#allocation2 + $0x68] sm:$0xff]
    %v74 = vld [vmem:[#allocation2 + $0x70] sm:$0xff]
    %v75 = vld [vmem:[#allocation2 + $0x78] sm:$0xff]
    %v76 = vld [vmem:[#allocation2 + $0x80] sm:$0xff]
    %v77 = vld [vmem:[#allocation2 + $0x88] sm:$0xff]
    %v78 = vld [vmem:[#allocation2 + $0x90] sm:$0xff]
    %v79 = vld [vmem:[#allocation2 + $0x98] sm:$0xff]
    %v80 = vld [vmem:[#allocation2 + $0xa0] sm:$0xff]
    %v81 = vld [vmem:[#allocation2 + $0xa8] sm:$0xff]
    %v82 = vld [vmem:[#allocation2 + $0xb0] sm:$0xff]
    %v83 = vld [vmem:[#allocation2 + $0xb8] sm:$0xff]
    %v84 = vld [vmem:[#allocation2 + $0xc0] sm:$0xff]
    %v85 = vld [vmem:[#allocation2 + $0xc8] sm:$0xff]
    %v86 = vld [vmem:[#allocation2 + $0xd0] sm:$0xff]
    %v87 = vld [vmem:[#allocation2 + $0xd8] sm:$0xff]
    %v88 = vld [vmem:[#allocation2 + $0xe0] sm:$0xff]
    %v89 = vld [vmem:[#allocation2 + $0xe8] sm:$0xff]
    %v90 = vld [vmem:[#allocation2 + $0xf0] sm:$0xff]
    %v91 = vld [vmem:[#allocation2 + $0xf8] sm:$0xff]
    %v92 = vld [vmem:[#allocation2 + $0x100] sm:$0xff]
    %v93 = vld [vmem:[#allocation2 + $0x108] sm:$0xff]
    %v94 = vld [vmem:[#allocation2 + $0x110] sm:$0xff]
    %v95 = vld [vmem:[#allocation2 + $0x118] sm:$0xff]
    %v96 = vld [vmem:[#allocation2 + $0x120] sm:$0xff]
    %v97 = vld [vmem:[#allocation2 + $0x128] sm:$0xff]
    %v98 = vld [vmem:[#allocation2 + $0x130] sm:$0xff]
    %v99 = vld [vmem:[#allocation2 + $0x138] sm:$0xff]
    %v100 = vld [vmem:[#allocation2 + $0x140] sm:$0xff]
    %v101 = vld [vmem:[#allocation2 + $0x148] sm:$0xff]
    %v102 = vld [vmem:[#allocation2 + $0x150] sm:$0xff]
    %v103 = vld [vmem:[#allocation2 + $0x158] sm:$0xff]
    %v104 = vld [vmem:[#allocation2 + $0x160] sm:$0xff]
    %v105 = vld [vmem:[#allocation2 + $0x168] sm:$0xff]
    %v106 = vld [vmem:[#allocation2 + $0x170] sm:$0xff]
    %v107 = vld [vmem:[#allocation2 + $0x178] sm:$0xff]
    %v108 = vld [vmem:[#allocation2 + $0x180] sm:$0xff]
    %v109 = vld [vmem:[#allocation2 + $0x188] sm:$0xff]
    %v110 = vld [vmem:[#allocation2 + $0x190] sm:$0xff]
    %v111 = vld [vmem:[#allocation2 + $0x198] sm:$0xff]
    %v112 = vld [vmem:[#allocation2 + $0x1a0] sm:$0xff]
    %v113 = vld [vmem:[#allocation2 + $0x1a8] sm:$0xff]
    %v114 = vld [vmem:[#allocation2 + $0x1b0] sm:$0xff]
    %v115 = vld [vmem:[#allocation2 + $0x1b8] sm:$0xff]
    %v116 = vld [vmem:[#allocation2 + $0x1c0] sm:$0xff]
    %v117 = vld [vmem:[#allocation2 + $0x1c8] sm:$0xff]
    %v118 = vld [vmem:[#allocation2 + $0x1d0] sm:$0xff]
    %v119 = vld [vmem:[#allocation2 + $0x1d8] sm:$0xff]
    %v120 = vld [vmem:[#allocation2 + $0x1e0] sm:$0xff]
    %v121 = vld [vmem:[#allocation2 + $0x1e8] sm:$0xff]
    %v122 = vld [vmem:[#allocation2 + $0x1f0] sm:$0xff]
    %v123 = vld [vmem:[#allocation2 + $0x1f8] sm:$0xff]
    %v124 = vld [vmem:[#allocation2 + $0x200] sm:$0xff]
    %v125 = vld [vmem:[#allocation2 + $0x208] sm:$0xff]
    %v126 = vld [vmem:[#allocation2 + $0x210] sm:$0xff]
    %v127 = vld [vmem:[#allocation2 + $0x218] sm:$0xff]
    %v128 = vld [vmem:[#allocation2 + $0x220] sm:$0xff]
    %v129 = vld [vmem:[#allocation2 + $0x228] sm:$0xff]
    %v130 = vld [vmem:[#allocation2 + $0x230] sm:$0xff]
    %v131 = vld [vmem:[#allocation2 + $0x238] sm:$0xff]
    %v132 = vld [vmem:[#allocation2 + $0x240] sm:$0xff]
    %v133 = vld [vmem:[#allocation2 + $0x248] sm:$0xff]
    %v134 = vld [vmem:[#allocation2 + $0x250] sm:$0xff]
    %v135 = vld [vmem:[#allocation2 + $0x258] sm:$0xff]
    %v136 = vld [vmem:[#allocation2 + $0x260] sm:$0xff]
    %v137 = vld [vmem:[#allocation2 + $0x268] sm:$0xff]
    %v138 = vld [vmem:[#allocation2 + $0x270] sm:$0xff]
    %v139 = vld [vmem:[#allocation2 + $0x278] sm:$0xff]
    %v140 = vld [vmem:[#allocation2 + $0x280] sm:$0xff]
    %v141 = vld [vmem:[#allocation2 + $0x288] sm:$0xff]
    %v142 = vld [vmem:[#allocation2 + $0x290] sm:$0xff]
    %v143 = vld [vmem:[#allocation2 + $0x298] sm:$0xff]
    %v144 = vld [vmem:[#allocation2 + $0x2a0] sm:$0xff]
    %v145 = vld [vmem:[#allocation2 + $0x2a8] sm:$0xff]
    %v146 = vld [vmem:[#allocation2 + $0x2b0] sm:$0xff]
    %v147 = vld [vmem:[#allocation2 + $0x2b8] sm:$0xff]
    %v148 = vld [vmem:[#allocation2 + $0x2c0] sm:$0xff]
    %v149 = vld [vmem:[#allocation2 + $0x2c8] sm:$0xff]
    %v150 = vld [vmem:[#allocation2 + $0x2d0] sm:$0xff]
    %v151 = vld [vmem:[#allocation2 + $0x2d8] sm:$0xff]
    %v152 = vld [vmem:[#allocation2 + $0x2e0] sm:$0xff]
    %v153 = vld [vmem:[#allocation2 + $0x2e8] sm:$0xff]
    %v154 = vld [vmem:[#allocation2 + $0x2f0] sm:$0xff]
    %v155 = vld [vmem:[#allocation2 + $0x2f8] sm:$0xff]
    %v156 = vld [vmem:[#allocation2 + $0x300] sm:$0xff]
    %v157 = vld [vmem:[#allocation2 + $0x308] sm:$0xff]
    %v158 = vld [vmem:[#allocation2 + $0x310] sm:$0xff]
    %v159 = vld [vmem:[#allocation2 + $0x318] sm:$0xff]
    %v160 = vld [vmem:[#allocation2 + $0x320] sm:$0xff]
    %v161 = vld [vmem:[#allocation2 + $0x328] sm:$0xff]
    %v162 = vld [vmem:[#allocation2 + $0x330] sm:$0xff]
    %v163 = vld [vmem:[#allocation2 + $0x338] sm:$0xff]
    %v164 = vld [vmem:[#allocation2 + $0x340] sm:$0xff]
    %v165 = vld [vmem:[#allocation2 + $0x348] sm:$0xff]
    %v166 = vld [vmem:[#allocation2 + $0x350] sm:$0xff]
    %v167 = vld [vmem:[#allocation2 + $0x358] sm:$0xff]
    %v168 = vld [vmem:[#allocation2 + $0x360] sm:$0xff]
    %v169 = vld [vmem:[#allocation2 + $0x368] sm:$0xff]
    %v170 = vld [vmem:[#allocation2 + $0x370] sm:$0xff]
    %v171 = vld [vmem:[#allocation2 + $0x378] sm:$0xff]
    %v172 = vld [vmem:[#allocation2 + $0x380] sm:$0xff]
    %v173 = vld [vmem:[#allocation2 + $0x388] sm:$0xff]
    %v174 = vld [vmem:[#allocation2 + $0x390] sm:$0xff]
    %v175 = vld [vmem:[#allocation2 + $0x398] sm:$0xff]
    %v176 = vld [vmem:[#allocation2 + $0x3a0] sm:$0xff]
    %v177 = vld [vmem:[#allocation2 + $0x3a8] sm:$0xff]
    %v178 = vld [vmem:[#allocation2 + $0x3b0] sm:$0xff]
    %v179 = vld [vmem:[#allocation2 + $0x3b8] sm:$0xff]
    %v180 = vld [vmem:[#allocation2 + $0x3c0] sm:$0xff]
    %v181 = vld [vmem:[#allocation2 + $0x3c8] sm:$0xff]
    %v182 = vld [vmem:[#allocation2 + $0x3d0] sm:$0xff]
    %v183 = vld [vmem:[#allocation2 + $0x3d8] sm:$0xff]
    %v184 = vld [vmem:[#allocation2 + $0x3e0] sm:$0xff]
    %v185 = vld [vmem:[#allocation2 + $0x3e8] sm:$0xff]
    %v186 = vld [vmem:[#allocation2 + $0x3f0] sm:$0xff]
    %v187 = vld [vmem:[#allocation2 + $0x3f8] sm:$0xff]
    %v188 = vld [vmem:[%s1] sm:$0xff]
    %v189 = vld [vmem:[%s3] sm:$0xff]
    %v190 = vld [vmem:[%s3 + $0x8] sm:$0xff]
    %v191 = vld [vmem:[%s3 + $0x10] sm:$0xff]
    %v192 = vld [vmem:[%s3 + $0x18] sm:$0xff]
    %vm193 = vcmask 261120
    %v195 = vsel %vm193, %v188, 0
    %197 = vmatprep.subr.mxu0 0.0
    %198 = vmatpush1.msra.mxu0 %v189
    %199 = vmatprep.subr.mxu0 0.0
    %200 = vmatpush1.msra.mxu0 %v190
    %201 = vmatprep.subr.mxu0 0.0
    %202 = vmatpush1.msra.mxu0 %v191
    %203 = vmatprep.subr.mxu0 0.0
    %204 = vmatpush1.msra.mxu0 %v192
    %205 = vmatprep.subr.mxu0 0.0
    %206 = vmatpush1.msra.mxu0 0.0
    %207 = vmatprep.subr.mxu0 0.0
    %208 = vmatpush1.msra.mxu0 0.0
    %209 = vmatprep.subr.mxu0 0.0
    %210 = vmatpush1.msra.mxu0 0.0
    %211 = vmatprep.subr.mxu0 0.0
    %212 = vmatpush1.msra.mxu0 0.0
    %213 = vmatprep.subr.mxu0 0.0
    %214 = vmatpush1.msra.mxu0 0.0
    %215 = vmatprep.subr.mxu0 0.0
    %216 = vmatpush1.msra.mxu0 0.0
    %217 = vmatprep.subr.mxu0 0.0
    %218 = vmatpush1.msra.mxu0 0.0
    %219 = vmatprep.subr.mxu0 0.0
    %220 = vmatpush1.msra.mxu0 0.0
    %221 = vmatprep.subr.mxu0 0.0
    %222 = vmatpush1.msra.mxu0 0.0
    %223 = vmatprep.subr.mxu0 0.0
    %224 = vmatpush1.msra.mxu0 0.0
    %225 = vmatprep.subr.mxu0 0.0
    %226 = vmatpush1.msra.mxu0 0.0
    %227 = vmatprep.subr.mxu0 0.0
    %228 = vmatpush1.msra.mxu0 0.0
    %229 = vmatprep.subr.mxu0 0.0
    %230 = vmatpush1.msra.mxu0 0.0
    %231 = vmatprep.subr.mxu0 0.0
    %232 = vmatpush1.msra.mxu0 0.0
    %233 = vmatprep.subr.mxu0 0.0
    %234 = vmatpush1.msra.mxu0 0.0
    %235 = vmatprep.subr.mxu0 0.0
    %236 = vmatpush1.msra.mxu0 0.0
    %237 = vmatprep.subr.mxu0 0.0
    %238 = vmatpush1.msra.mxu0 0.0
    %239 = vmatprep.subr.mxu0 0.0
    %240 = vmatpush1.msra.mxu0 0.0
    %241 = vmatprep.subr.mxu0 0.0
    %242 = vmatpush1.msra.mxu0 0.0
    %243 = vmatprep.subr.mxu0 0.0
    %244 = vmatpush1.msra.mxu0 0.0
    %245 = vmatprep.subr.mxu0 0.0
    %246 = vmatpush1.msra.mxu0 0.0
    %247 = vmatprep.subr.mxu0 0.0
    %248 = vmatpush1.msra.mxu0 0.0
    %249 = vmatprep.subr.mxu0 0.0
    %250 = vmatpush1.msra.mxu0 0.0
    %251 = vmatprep.subr.mxu0 0.0
    %252 = vmatpush1.msra.mxu0 0.0
    %253 = vmatprep.subr.mxu0 0.0
    %254 = vmatpush1.msra.mxu0 0.0
    %255 = vmatprep.subr.mxu0 0.0
    %256 = vmatpush1.msra.mxu0 0.0
    %257 = vmatprep.subr.mxu0 0.0
    %258 = vmatpush1.msra.mxu0 0.0
    %259 = vmatprep.subr.mxu0 0.0
    %260 = vmatpush1.msra.mxu0 0.0
    %261 = vmatprep.mubr.f32.mxu0 0.0
    %262 = vmatmul.mubr.f32.gmra.mrb[0].mxu0 %v195
    %v263 = vpop.f32.mrb[0].mxu0
    %v264 = vadd.f32 0.0, %v263
    %v265 = vpop.f32.mrb[0].mxu0
    %266 = vdwg.mxu0
    %267 = vmatprep.subr.mxu0 0.0
    %268 = vmatpush1.msra.mxu0 %v60
    %269 = vmatprep.subr.mxu0 0.0
    %270 = vmatpush1.msra.mxu0 %v61
    %271 = vmatprep.subr.mxu0 0.0
    %272 = vmatpush1.msra.mxu0 %v62
    %273 = vmatprep.subr.mxu0 0.0
    %274 = vmatpush1.msra.mxu0 %v63
    %275 = vmatprep.subr.mxu0 0.0
    %276 = vmatpush1.msra.mxu0 %v64
    %277 = vmatprep.subr.mxu0 0.0
    %278 = vmatpush1.msra.mxu0 %v65
    %279 = vmatprep.subr.mxu0 0.0
    %280 = vmatpush1.msra.mxu0 %v66
    %281 = vmatprep.subr.mxu0 0.0
    %282 = vmatpush1.msra.mxu0 %v67
    %283 = vmatprep.subr.mxu0 0.0
    %284 = vmatpush1.msra.mxu0 %v68
    %285 = vmatprep.subr.mxu0 0.0
    %286 = vmatpush1.msra.mxu0 %v69
    %287 = vmatprep.subr.mxu0 0.0
    %288 = vmatpush1.msra.mxu0 %v70
    %289 = vmatprep.subr.mxu0 0.0
    %290 = vmatpush1.msra.mxu0 %v71
    %291 = vmatprep.subr.mxu0 0.0
    %292 = vmatpush1.msra.mxu0 %v72
    %293 = vmatprep.subr.mxu0 0.0
    %294 = vmatpush1.msra.mxu0 %v73
    %295 = vmatprep.subr.mxu0 0.0
    %296 = vmatpush1.msra.mxu0 %v74
    %297 = vmatprep.subr.mxu0 0.0
    %298 = vmatpush1.msra.mxu0 %v75
    %299 = vmatprep.subr.mxu0 0.0
    %300 = vmatpush1.msra.mxu0 %v76
    %301 = vmatprep.subr.mxu0 0.0
    %302 = vmatpush1.msra.mxu0 %v77
    %303 = vmatprep.subr.mxu0 0.0
    %304 = vmatpush1.msra.mxu0 %v78
    %305 = vmatprep.subr.mxu0 0.0
    %306 = vmatpush1.msra.mxu0 %v79
    %307 = vmatprep.subr.mxu0 0.0
    %308 = vmatpush1.msra.mxu0 %v80
    %309 = vmatprep.subr.mxu0 0.0
    %310 = vmatpush1.msra.mxu0 %v81
    %311 = vmatprep.subr.mxu0 0.0
    %312 = vmatpush1.msra.mxu0 %v82
    %313 = vmatprep.subr.mxu0 0.0
    %314 = vmatpush1.msra.mxu0 %v83
    %315 = vmatprep.subr.mxu0 0.0
    %316 = vmatpush1.msra.mxu0 %v84
    %317 = vmatprep.subr.mxu0 0.0
    %318 = vmatpush1.msra.mxu0 %v85
    %319 = vmatprep.subr.mxu0 0.0
    %320 = vmatpush1.msra.mxu0 %v86
    %321 = vmatprep.subr.mxu0 0.0
    %322 = vmatpush1.msra.mxu0 %v87
    %323 = vmatprep.subr.mxu0 0.0
    %324 = vmatpush1.msra.mxu0 %v88
    %325 = vmatprep.subr.mxu0 0.0
    %326 = vmatpush1.msra.mxu0 %v89
    %327 = vmatprep.subr.mxu0 0.0
    %328 = vmatpush1.msra.mxu0 %v90
    %329 = vmatprep.subr.mxu0 0.0
    %330 = vmatpush1.msra.mxu0 %v91
    %331 = vmatprep.mubr.f32.mxu0 %v53
    %332 = vmatmul.mubr.f32.gmra.mrb[0].mxu0 %v52
    %v333 = vpop.f32.mrb[0].mxu0
    %v334 = vadd.f32 %v264, %v333
    %v335 = vpop.f32.mrb[0].mxu0
    %336 = vdwg.mxu0
    %337 = vmatprep.subr.mxu0 0.0
    %338 = vmatpush1.msra.mxu0 %v92
    %339 = vmatprep.subr.mxu0 0.0
    %340 = vmatpush1.msra.mxu0 %v93
    %341 = vmatprep.subr.mxu0 0.0
    %342 = vmatpush1.msra.mxu0 %v94
    %343 = vmatprep.subr.mxu0 0.0
    %344 = vmatpush1.msra.mxu0 %v95
    %345 = vmatprep.subr.mxu0 0.0
    %346 = vmatpush1.msra.mxu0 %v96
    %347 = vmatprep.subr.mxu0 0.0
    %348 = vmatpush1.msra.mxu0 %v97
    %349 = vmatprep.subr.mxu0 0.0
    %350 = vmatpush1.msra.mxu0 %v98
    %351 = vmatprep.subr.mxu0 0.0
    %352 = vmatpush1.msra.mxu0 %v99
    %353 = vmatprep.subr.mxu0 0.0
    %354 = vmatpush1.msra.mxu0 %v100
    %355 = vmatprep.subr.mxu0 0.0
    %356 = vmatpush1.msra.mxu0 %v101
    %357 = vmatprep.subr.mxu0 0.0
    %358 = vmatpush1.msra.mxu0 %v102
    %359 = vmatprep.subr.mxu0 0.0
    %360 = vmatpush1.msra.mxu0 %v103
    %361 = vmatprep.subr.mxu0 0.0
    %362 = vmatpush1.msra.mxu0 %v104
    %363 = vmatprep.subr.mxu0 0.0
    %364 = vmatpush1.msra.mxu0 %v105
    %365 = vmatprep.subr.mxu0 0.0
    %366 = vmatpush1.msra.mxu0 %v106
    %367 = vmatprep.subr.mxu0 0.0
    %368 = vmatpush1.msra.mxu0 %v107
    %369 = vmatprep.subr.mxu0 0.0
    %370 = vmatpush1.msra.mxu0 %v108
    %371 = vmatprep.subr.mxu0 0.0
    %372 = vmatpush1.msra.mxu0 %v109
    %373 = vmatprep.subr.mxu0 0.0
    %374 = vmatpush1.msra.mxu0 %v110
    %375 = vmatprep.subr.mxu0 0.0
    %376 = vmatpush1.msra.mxu0 %v111
    %377 = vmatprep.subr.mxu0 0.0
    %378 = vmatpush1.msra.mxu0 %v112
    %379 = vmatprep.subr.mxu0 0.0
    %380 = vmatpush1.msra.mxu0 %v113
    %381 = vmatprep.subr.mxu0 0.0
    %382 = vmatpush1.msra.mxu0 %v114
    %383 = vmatprep.subr.mxu0 0.0
    %384 = vmatpush1.msra.mxu0 %v115
    %385 = vmatprep.subr.mxu0 0.0
    %386 = vmatpush1.msra.mxu0 %v116
    %387 = vmatprep.subr.mxu0 0.0
    %388 = vmatpush1.msra.mxu0 %v117
    %389 = vmatprep.subr.mxu0 0.0
    %390 = vmatpush1.msra.mxu0 %v118
    %391 = vmatprep.subr.mxu0 0.0
    %392 = vmatpush1.msra.mxu0 %v119
    %393 = vmatprep.subr.mxu0 0.0
    %394 = vmatpush1.msra.mxu0 %v120
    %395 = vmatprep.subr.mxu0 0.0
    %396 = vmatpush1.msra.mxu0 %v121
    %397 = vmatprep.subr.mxu0 0.0
    %398 = vmatpush1.msra.mxu0 %v122
    %399 = vmatprep.subr.mxu0 0.0
    %400 = vmatpush1.msra.mxu0 %v123
    %401 = vmatprep.mubr.f32.mxu0 %v55
    %402 = vmatmul.mubr.f32.gmra.mrb[0].mxu0 %v54
    %v403 = vpop.f32.mrb[0].mxu0
    %v404 = vadd.f32 %v334, %v403
    %v405 = vpop.f32.mrb[0].mxu0
    %406 = vdwg.mxu0
    %407 = vmatprep.subr.mxu0 0.0
    %408 = vmatpush1.msra.mxu0 %v124
    %409 = vmatprep.subr.mxu0 0.0
    %410 = vmatpush1.msra.mxu0 %v125
    %411 = vmatprep.subr.mxu0 0.0
    %412 = vmatpush1.msra.mxu0 %v126
    %413 = vmatprep.subr.mxu0 0.0
    %414 = vmatpush1.msra.mxu0 %v127
    %415 = vmatprep.subr.mxu0 0.0
    %416 = vmatpush1.msra.mxu0 %v128
    %417 = vmatprep.subr.mxu0 0.0
    %418 = vmatpush1.msra.mxu0 %v129
    %419 = vmatprep.subr.mxu0 0.0
    %420 = vmatpush1.msra.mxu0 %v130
    %421 = vmatprep.subr.mxu0 0.0
    %422 = vmatpush1.msra.mxu0 %v131
    %423 = vmatprep.subr.mxu0 0.0
    %424 = vmatpush1.msra.mxu0 %v132
    %425 = vmatprep.subr.mxu0 0.0
    %426 = vmatpush1.msra.mxu0 %v133
    %427 = vmatprep.subr.mxu0 0.0
    %428 = vmatpush1.msra.mxu0 %v134
    %429 = vmatprep.subr.mxu0 0.0
    %430 = vmatpush1.msra.mxu0 %v135
    %431 = vmatprep.subr.mxu0 0.0
    %432 = vmatpush1.msra.mxu0 %v136
    %433 = vmatprep.subr.mxu0 0.0
    %434 = vmatpush1.msra.mxu0 %v137
    %435 = vmatprep.subr.mxu0 0.0
    %436 = vmatpush1.msra.mxu0 %v138
    %437 = vmatprep.subr.mxu0 0.0
    %438 = vmatpush1.msra.mxu0 %v139
    %439 = vmatprep.subr.mxu0 0.0
    %440 = vmatpush1.msra.mxu0 %v140
    %441 = vmatprep.subr.mxu0 0.0
    %442 = vmatpush1.msra.mxu0 %v141
    %443 = vmatprep.subr.mxu0 0.0
    %444 = vmatpush1.msra.mxu0 %v142
    %445 = vmatprep.subr.mxu0 0.0
    %446 = vmatpush1.msra.mxu0 %v143
    %447 = vmatprep.subr.mxu0 0.0
    %448 = vmatpush1.msra.mxu0 %v144
    %449 = vmatprep.subr.mxu0 0.0
    %450 = vmatpush1.msra.mxu0 %v145
    %451 = vmatprep.subr.mxu0 0.0
    %452 = vmatpush1.msra.mxu0 %v146
    %453 = vmatprep.subr.mxu0 0.0
    %454 = vmatpush1.msra.mxu0 %v147
    %455 = vmatprep.subr.mxu0 0.0
    %456 = vmatpush1.msra.mxu0 %v148
    %457 = vmatprep.subr.mxu0 0.0
    %458 = vmatpush1.msra.mxu0 %v149
    %459 = vmatprep.subr.mxu0 0.0
    %460 = vmatpush1.msra.mxu0 %v150
    %461 = vmatprep.subr.mxu0 0.0
    %462 = vmatpush1.msra.mxu0 %v151
    %463 = vmatprep.subr.mxu0 0.0
    %464 = vmatpush1.msra.mxu0 %v152
    %465 = vmatprep.subr.mxu0 0.0
    %466 = vmatpush1.msra.mxu0 %v153
    %467 = vmatprep.subr.mxu0 0.0
    %468 = vmatpush1.msra.mxu0 %v154
    %469 = vmatprep.subr.mxu0 0.0
    %470 = vmatpush1.msra.mxu0 %v155
    %471 = vmatprep.mubr.f32.mxu0 %v57
    %472 = vmatmul.mubr.f32.gmra.mrb[0].mxu0 %v56
    %v473 = vpop.f32.mrb[0].mxu0
    %v474 = vadd.f32 %v404, %v473
    %v475 = vpop.f32.mrb[0].mxu0
    %476 = vdwg.mxu0
    %477 = vmatprep.subr.mxu0 0.0
    %478 = vmatpush1.msra.mxu0 %v156
    %479 = vmatprep.subr.mxu0 0.0
    %480 = vmatpush1.msra.mxu0 %v157
    %481 = vmatprep.subr.mxu0 0.0
    %482 = vmatpush1.msra.mxu0 %v158
    %483 = vmatprep.subr.mxu0 0.0
    %484 = vmatpush1.msra.mxu0 %v159
    %485 = vmatprep.subr.mxu0 0.0
    %486 = vmatpush1.msra.mxu0 %v160
    %487 = vmatprep.subr.mxu0 0.0
    %488 = vmatpush1.msra.mxu0 %v161
    %489 = vmatprep.subr.mxu0 0.0
    %490 = vmatpush1.msra.mxu0 %v162
    %491 = vmatprep.subr.mxu0 0.0
    %492 = vmatpush1.msra.mxu0 %v163
    %493 = vmatprep.subr.mxu0 0.0
    %494 = vmatpush1.msra.mxu0 %v164
    %495 = vmatprep.subr.mxu0 0.0
    %496 = vmatpush1.msra.mxu0 %v165
    %497 = vmatprep.subr.mxu0 0.0
    %498 = vmatpush1.msra.mxu0 %v166
    %499 = vmatprep.subr.mxu0 0.0
    %500 = vmatpush1.msra.mxu0 %v167
    %501 = vmatprep.subr.mxu0 0.0
    %502 = vmatpush1.msra.mxu0 %v168
    %503 = vmatprep.subr.mxu0 0.0
    %504 = vmatpush1.msra.mxu0 %v169
    %505 = vmatprep.subr.mxu0 0.0
    %506 = vmatpush1.msra.mxu0 %v170
    %507 = vmatprep.subr.mxu0 0.0
    %508 = vmatpush1.msra.mxu0 %v171
    %509 = vmatprep.subr.mxu0 0.0
    %510 = vmatpush1.msra.mxu0 %v172
    %511 = vmatprep.subr.mxu0 0.0
    %512 = vmatpush1.msra.mxu0 %v173
    %513 = vmatprep.subr.mxu0 0.0
    %514 = vmatpush1.msra.mxu0 %v174
    %515 = vmatprep.subr.mxu0 0.0
    %516 = vmatpush1.msra.mxu0 %v175
    %517 = vmatprep.subr.mxu0 0.0
    %518 = vmatpush1.msra.mxu0 %v176
    %519 = vmatprep.subr.mxu0 0.0
    %520 = vmatpush1.msra.mxu0 %v177
    %521 = vmatprep.subr.mxu0 0.0
    %522 = vmatpush1.msra.mxu0 %v178
    %523 = vmatprep.subr.mxu0 0.0
    %524 = vmatpush1.msra.mxu0 %v179
    %525 = vmatprep.subr.mxu0 0.0
    %526 = vmatpush1.msra.mxu0 %v180
    %527 = vmatprep.subr.mxu0 0.0
    %528 = vmatpush1.msra.mxu0 %v181
    %529 = vmatprep.subr.mxu0 0.0
    %530 = vmatpush1.msra.mxu0 %v182
    %531 = vmatprep.subr.mxu0 0.0
    %532 = vmatpush1.msra.mxu0 %v183
    %533 = vmatprep.subr.mxu0 0.0
    %534 = vmatpush1.msra.mxu0 %v184
    %535 = vmatprep.subr.mxu0 0.0
    %536 = vmatpush1.msra.mxu0 %v185
    %537 = vmatprep.subr.mxu0 0.0
    %538 = vmatpush1.msra.mxu0 %v186
    %539 = vmatprep.subr.mxu0 0.0
    %540 = vmatpush1.msra.mxu0 %v187
    %541 = vmatprep.mubr.f32.mxu0 %v59
    %542 = vmatmul.mubr.f32.gmra.mrb[0].mxu0 %v58
    %v543 = vpop.f32.mrb[0].mxu0
    %v544 = vadd.f32 %v474, %v543
    %v545 = vpop.f32.mrb[0].mxu0
    %546 = vdwg.mxu0
    %v547 = vlaneseq
    %v548 = vshrl.u32 %v547, 7
    %v549 = vsub.s32 0, %v548
    %v550 = vrot.slane %v51, %v549
    %v551 = vadd.f32 %v544, %v550
    %v552 = vtanh.pop %v551
    %v553 = vld [vmem:[#allocation4] sm:$0xff]
    %v554 = vld [vmem:[#allocation4 + $0x8] sm:$0xff]
    %v555 = vld [vmem:[#allocation4 + $0x10] sm:$0xff]
    %v556 = vld [vmem:[#allocation4 + $0x18] sm:$0xff]
    %v557 = vld [vmem:[#allocation4 + $0x20] sm:$0xff]
    %v558 = vld [vmem:[#allocation4 + $0x28] sm:$0xff]
    %v559 = vld [vmem:[#allocation4 + $0x30] sm:$0xff]
    %v560 = vld [vmem:[#allocation4 + $0x38] sm:$0xff]
    %v561 = vld [vmem:[#allocation4 + $0x40] sm:$0xff]
    %v562 = vld [vmem:[#allocation4 + $0x48] sm:$0xff]
    %v563 = vld [vmem:[#allocation4 + $0x50] sm:$0xff]
    %v564 = vld [vmem:[#allocation4 + $0x58] sm:$0xff]
    %v565 = vld [vmem:[#allocation4 + $0x60] sm:$0xff]
    %v566 = vld [vmem:[#allocation4 + $0x68] sm:$0xff]
    %v567 = vld [vmem:[#allocation4 + $0x70] sm:$0xff]
    %v568 = vld [vmem:[#allocation4 + $0x78] sm:$0xff]
    %v569 = vlaneseq
    %v570 = vshrl.u32 %v569, 7
    %v571 = vsub.s32 1, %v570
    %v572 = vrot.slane %v51, %v571
    %573 = vmatprep.subr.mxu0 0.0
    %574 = vmatpush1.msra.mxu0 %v553
    %575 = vmatprep.subr.mxu0 0.0
    %576 = vmatpush1.msra.mxu0 %v554
    %577 = vmatprep.subr.mxu0 0.0
    %578 = vmatpush1.msra.mxu0 %v555
    %579 = vmatprep.subr.mxu0 0.0
    %580 = vmatpush1.msra.mxu0 %v556
    %581 = vmatprep.subr.mxu0 0.0
    %582 = vmatpush1.msra.mxu0 %v557
    %583 = vmatprep.subr.mxu0 0.0
    %584 = vmatpush1.msra.mxu0 %v558
    %585 = vmatprep.subr.mxu0 0.0
    %586 = vmatpush1.msra.mxu0 %v559
    %587 = vmatprep.subr.mxu0 0.0
    %588 = vmatpush1.msra.mxu0 %v560
    %589 = vmatprep.subr.mxu0 0.0
    %590 = vmatpush1.msra.mxu0 %v561
    %591 = vmatprep.subr.mxu0 0.0
    %592 = vmatpush1.msra.mxu0 %v562
    %593 = vmatprep.subr.mxu0 0.0
    %594 = vmatpush1.msra.mxu0 %v563
    %595 = vmatprep.subr.mxu0 0.0
    %596 = vmatpush1.msra.mxu0 %v564
    %597 = vmatprep.subr.mxu0 0.0
    %598 = vmatpush1.msra.mxu0 %v565
    %599 = vmatprep.subr.mxu0 0.0
    %600 = vmatpush1.msra.mxu0 %v566
    %601 = vmatprep.subr.mxu0 0.0
    %602 = vmatpush1.msra.mxu0 %v567
    %603 = vmatprep.subr.mxu0 0.0
    %604 = vmatpush1.msra.mxu0 %v568
    %605 = vmatprep.subr.mxu0 0.0
    %606 = vmatpush1.msra.mxu0 0.0
    %607 = vmatprep.subr.mxu0 0.0
    %608 = vmatpush1.msra.mxu0 0.0
    %609 = vmatprep.subr.mxu0 0.0
    %610 = vmatpush1.msra.mxu0 0.0
    %611 = vmatprep.subr.mxu0 0.0
    %612 = vmatpush1.msra.mxu0 0.0
    %613 = vmatprep.subr.mxu0 0.0
    %614 = vmatpush1.msra.mxu0 0.0
    %615 = vmatprep.subr.mxu0 0.0
    %616 = vmatpush1.msra.mxu0 0.0
    %617 = vmatprep.subr.mxu0 0.0
    %618 = vmatpush1.msra.mxu0 0.0
    %619 = vmatprep.subr.mxu0 0.0
    %620 = vmatpush1.msra.mxu0 0.0
    %621 = vmatprep.subr.mxu0 0.0
    %622 = vmatpush1.msra.mxu0 0.0
    %623 = vmatprep.subr.mxu0 0.0
    %624 = vmatpush1.msra.mxu0 0.0
    %625 = vmatprep.subr.mxu0 0.0
    %626 = vmatpush1.msra.mxu0 0.0
    %627 = vmatprep.subr.mxu0 0.0
    %628 = vmatpush1.msra.mxu0 0.0
    %629 = vmatprep.subr.mxu0 0.0
    %630 = vmatpush1.msra.mxu0 0.0
    %631 = vmatprep.subr.mxu0 0.0
    %632 = vmatpush1.msra.mxu0 0.0
    %633 = vmatprep.subr.mxu0 0.0
    %634 = vmatpush1.msra.mxu0 0.0
    %635 = vmatprep.subr.mxu0 0.0
    %636 = vmatpush1.msra.mxu0 0.0
    %637 = vmatprep.mubr.f32.mxu0 0.0
    %638 = vmatmul.mubr.f32.gmra.mrb[0].mxu0 %v552
    %v639 = vpop.f32.mrb[0].mxu0
    %v640 = vadd.f32 %v572, %v639
    %v641 = vpop.f32.mrb[0].mxu0
    %642 = vdwg.mxu0
    %v643 = vmax.f32 %v640, 0.0
    %s644 = scalar_lea.vmem [#allocation4], 128
    %v645 = vld [vmem:[%s644] sm:$0xff]
    %v646 = vld [vmem:[%s644 + $0x8] sm:$0xff]
    %v647 = vld [vmem:[%s644 + $0x10] sm:$0xff]
    %v648 = vld [vmem:[%s644 + $0x18] sm:$0xff]
    %v649 = vld [vmem:[%s644 + $0x20] sm:$0xff]
    %v650 = vld [vmem:[%s644 + $0x28] sm:$0xff]
    %v651 = vld [vmem:[%s644 + $0x30] sm:$0xff]
    %v652 = vld [vmem:[%s644 + $0x38] sm:$0xff]
    %v653 = vld [vmem:[%s644 + $0x40] sm:$0xff]
    %v654 = vld [vmem:[%s644 + $0x48] sm:$0xff]
    %v655 = vld [vmem:[%s644 + $0x50] sm:$0xff]
    %v656 = vld [vmem:[%s644 + $0x58] sm:$0xff]
    %v657 = vld [vmem:[%s644 + $0x60] sm:$0xff]
    %v658 = vld [vmem:[%s644 + $0x68] sm:$0xff]
    %v659 = vld [vmem:[%s644 + $0x70] sm:$0xff]
    %v660 = vld [vmem:[%s644 + $0x78] sm:$0xff]
    %v661 = vlaneseq
    %v662 = vshrl.u32 %v661, 7
    %v663 = vsub.s32 2, %v662
    %v664 = vrot.slane %v51, %v663
    %665 = vmatprep.subr.mxu0 0.0
    %666 = vmatpush1.msra.mxu0 %v645
    %667 = vmatprep.subr.mxu0 0.0
    %668 = vmatpush1.msra.mxu0 %v646
    %669 = vmatprep.subr.mxu0 0.0
    %670 = vmatpush1.msra.mxu0 %v647
    %671 = vmatprep.subr.mxu0 0.0
    %672 = vmatpush1.msra.mxu0 %v648
    %673 = vmatprep.subr.mxu0 0.0
    %674 = vmatpush1.msra.mxu0 %v649
    %675 = vmatprep.subr.mxu0 0.0
    %676 = vmatpush1.msra.mxu0 %v650
    %677 = vmatprep.subr.mxu0 0.0
    %678 = vmatpush1.msra.mxu0 %v651
    %679 = vmatprep.subr.mxu0 0.0
    %680 = vmatpush1.msra.mxu0 %v652
    %681 = vmatprep.subr.mxu0 0.0
    %682 = vmatpush1.msra.mxu0 %v653
    %683 = vmatprep.subr.mxu0 0.0
    %684 = vmatpush1.msra.mxu0 %v654
    %685 = vmatprep.subr.mxu0 0.0
    %686 = vmatpush1.msra.mxu0 %v655
    %687 = vmatprep.subr.mxu0 0.0
    %688 = vmatpush1.msra.mxu0 %v656
    %689 = vmatprep.subr.mxu0 0.0
    %690 = vmatpush1.msra.mxu0 %v657
    %691 = vmatprep.subr.mxu0 0.0
    %692 = vmatpush1.msra.mxu0 %v658
    %693 = vmatprep.subr.mxu0 0.0
    %694 = vmatpush1.msra.mxu0 %v659
    %695 = vmatprep.subr.mxu0 0.0
    %696 = vmatpush1.msra.mxu0 %v660
    %697 = vmatprep.subr.mxu0 0.0
    %698 = vmatpush1.msra.mxu0 0.0
    %699 = vmatprep.subr.mxu0 0.0
    %700 = vmatpush1.msra.mxu0 0.0
    %701 = vmatprep.subr.mxu0 0.0
    %702 = vmatpush1.msra.mxu0 0.0
    %703 = vmatprep.subr.mxu0 0.0
    %704 = vmatpush1.msra.mxu0 0.0
    %705 = vmatprep.subr.mxu0 0.0
    %706 = vmatpush1.msra.mxu0 0.0
    %707 = vmatprep.subr.mxu0 0.0
    %708 = vmatpush1.msra.mxu0 0.0
    %709 = vmatprep.subr.mxu0 0.0
    %710 = vmatpush1.msra.mxu0 0.0
    %711 = vmatprep.subr.mxu0 0.0
    %712 = vmatpush1.msra.mxu0 0.0
    %713 = vmatprep.subr.mxu0 0.0
    %714 = vmatpush1.msra.mxu0 0.0
    %715 = vmatprep.subr.mxu0 0.0
    %716 = vmatpush1.msra.mxu0 0.0
    %717 = vmatprep.subr.mxu0 0.0
    %718 = vmatpush1.msra.mxu0 0.0
    %719 = vmatprep.subr.mxu0 0.0
    %720 = vmatpush1.msra.mxu0 0.0
    %721 = vmatprep.subr.mxu0 0.0
    %722 = vmatpush1.msra.mxu0 0.0
    %723 = vmatprep.subr.mxu0 0.0
    %724 = vmatpush1.msra.mxu0 0.0
    %725 = vmatprep.subr.mxu0 0.0
    %726 = vmatpush1.msra.mxu0 0.0
    %727 = vmatprep.subr.mxu0 0.0
    %728 = vmatpush1.msra.mxu0 0.0
    %729 = vmatprep.mubr.f32.mxu0 0.0
    %730 = vmatmul.mubr.f32.gmra.mrb[0].mxu0 %v643
    %v731 = vpop.f32.mrb[0].mxu0
    %v732 = vadd.f32 %v664, %v731
    %v733 = vpop.f32.mrb[0].mxu0
    %734 = vdwg.mxu0
    %v735 = vadd.f32 %v552, %v732
    %736 = vst [vmem:[%s6] sm:$0xff] %v735
    // Predicated region
    $region34: #{mario_agent_forward.1} parent=1 // pred_check
      _
    $region35: #{mario_agent_forward.1} parent=1 // pred_check_branch
      %738 = sbr.rel (0) target = $region37
    $region36: #{mario_agent_forward.1} parent=1 // pred_region
      _
    $region37: #{mario_agent_forward.1} parent=1 // pred_fallthru
      _
    // Predicated region
    $region38: #{mario_agent_forward.1} parent=1 // pred_check
      _
    $region39: #{mario_agent_forward.1} parent=1 // pred_check_branch
      %740 = sbr.rel (0) target = $region41
    $region40: #{mario_agent_forward.1} parent=1 // pred_region
      _
    $region41: #{mario_agent_forward.1} parent=1 // pred_fallthru
      _
    %741 = vsyncpa [#allocation3], 1
    %742 = vsyncpa [#allocation5], 1

</llo_original>
